<compile_context>
chip_gen: v7x
topology: tpu7x:2x2x1
jax: 0.10.0
libtpu: 0.0.40
codegen_flags: <defaults>
</compile_context>

<pallas_src>
import functools
import math

import jax
import jax.numpy as jnp
import numpy as np
from jax.experimental import pallas as pl
from jax.experimental.pallas import tpu as pltpu


# ---------------------------------------------------------------------------
# Pallas kernel: processes a block of `Bb` batch elements per grid step.
# ---------------------------------------------------------------------------
def gnn_layer_kernel(
    node_ref,       # (Bb, N, F)
    edge_ref,       # (Bb, N*N, E)
    wn_ref,         # (F, 2M+F+S)  fused node-LHS weight [w_ms | w_mn | w_nun | W_sh]
    we_ref,         # (E, M+E)     fused edge-LHS weight [w_me | w_eue]
    ws_ref,         # (S, 2E)      fused shrink-LHS weight [w_eus | w_eun]
    wm_ref,         # (M, F)       node-update weight, "message" slice
    b_ref,          # (1, M+F+S+E) fused biases [b_msg | b_nu | b_sh | b_eu]
    node_out_ref,   # (Bb, N, F)
    edge_out_ref,   # (Bb, N*N, E)
):
    f32 = jnp.float32
    Bb, N, F = node_ref.shape
    E = edge_ref.shape[-1]
    M = wm_ref.shape[0]
    S = ws_ref.shape[0]

    node = node_ref[...]                               # (Bb, N, F)
    edge = edge_ref[...]                               # (Bb, N*N, E)
    node2d = node.reshape(Bb * N, F)                   # fold batch into rows
    edge2d = edge.reshape(Bb * N * N, E)

    b_all = b_ref[0]                                   # (M+F+S+E,)
    b_msg = b_all[:M]
    b_nu = b_all[M:M + F]
    b_sh = b_all[M + F:M + F + S]
    b_eu = b_all[M + F + S:]

    # --- one MXU push for everything that multiplies the node features ------
    n_fused = jnp.dot(node2d, wn_ref[...], preferred_element_type=f32)  # (Bb*N, 2M+F+S)
    m_self = n_fused[:, :M].reshape(Bb, N, M)          # node @ w_msg_self
    m_nbr = n_fused[:, M:2 * M].reshape(Bb, N, M)      # node @ w_msg_neighbor
    nu_node = n_fused[:, 2 * M:2 * M + F]              # node @ w_nu_node   (Bb*N, F)
    shrink = n_fused[:, 2 * M + F:] + b_sh[None, :]    # node_shrink_layer  (Bb*N, S)

    # --- one MXU push for everything that multiplies the edge features ------
    e_fused = jnp.dot(edge2d, we_ref[...], preferred_element_type=f32)  # (Bb*N*N, M+E)
    m_edge = e_fused[:, :M].reshape(Bb, N, N, M)       # edge @ w_msg_edge
    e_edge = e_fused[:, M:].reshape(Bb, N, N, E)       # edge @ w_eu_edge

    # --- message generation: mean_j ReLU(self_i + nbr_j + edge_ij + b) ------
    pre = (m_self[:, :, None, :] + m_nbr[:, None, :, :] + m_edge
           + b_msg[None, None, None, :])               # (Bb, N, N, M)
    # sum over the neighbor axis and scale by the compile-time constant 1/N
    message = jnp.sum(jnp.maximum(pre, 0.0), axis=2) * (1.0 / N)        # (Bb, N, M)

    # --- node update: Linear(cat(message, node)) as split matmul ------------
    new_node = (jnp.dot(message.reshape(Bb * N, M), wm_ref[...],
                        preferred_element_type=f32)
                + nu_node + b_nu[None, :])              # (Bb*N, F)
    node_out_ref[...] = node + new_node.reshape(Bb, N, F)

    # --- edge update: Linear(cat(shrink_self, shrink_nbr, edge)) ------------
    s_fused = jnp.dot(shrink, ws_ref[...], preferred_element_type=f32)  # (Bb*N, 2E)
    e_self = s_fused[:, :E].reshape(Bb, N, E)
    e_nbr = s_fused[:, E:].reshape(Bb, N, E)
    new_edge = (e_self[:, :, None, :] + e_nbr[:, None, :, :] + e_edge
                + b_eu[None, None, None, :]).reshape(Bb, N * N, E)
    # edge_feature_mask: keep the update only where the original edge > 0
    edge_out_ref[...] = edge + jnp.where(edge > 0, new_edge, 0.0)


# ---------------------------------------------------------------------------
# Wrapper
# ---------------------------------------------------------------------------
def _pick_batch_block(B, N):
    """Largest divisor of B keeping >=2 grid steps (v7x has 2 TensorCores)
    while bounding edge rows per step (Bb * N^2) to ~1024."""
    best = 1
    for bb in range(1, B + 1):
        if B % bb:
            continue
        if B >= 2 and B // bb < 2:
            continue
        if bb * N * N > 1024:
            continue
        best = bb
    return best


@jax.jit
def gnn_layer(node_features, edge_features, params):
    B, N, F = node_features.shape
    E = edge_features.shape[-1]
    M = params["b_msg"].shape[-1]
    S = params["b_sh"].shape[-1]
    bb = _pick_batch_block(B, N)

    # Split the concat-weights (exactly equivalent to concat @ W) and
    # re-concatenate them by shared LHS so the kernel runs 4 wide matmuls
    # instead of 8 narrow ones.
    W_msg, W_nu, W_eu = params["W_msg"], params["W_nu"], params["W_eu"]
    w_ms, w_mn, w_me = W_msg[:F], W_msg[F:2 * F], W_msg[2 * F:]
    w_num, w_nun = W_nu[:M], W_nu[M:]
    w_eus, w_eun, w_eue = W_eu[:S], W_eu[S:2 * S], W_eu[2 * S:]

    wn_all = jnp.concatenate([w_ms, w_mn, w_nun, params["W_sh"]], axis=1)  # (F, 2M+F+S)
    we_all = jnp.concatenate([w_me, w_eue], axis=1)                        # (E, M+E)
    ws_all = jnp.concatenate([w_eus, w_eun], axis=1)                       # (S, 2E)
    b_all = jnp.concatenate([params["b_msg"], params["b_nu"],
                             params["b_sh"], params["b_eu"]], axis=1)      # (1, M+F+S+E)

    # Flatten the two node axes of the edge tensor in the wrapper (free layout
    # plumbing); the kernel then sees a row-major (N^2, E) tile.
    edge_flat = edge_features.reshape(B, N * N, E)

    in_specs = [
        pl.BlockSpec((bb, N, F), lambda i: (i, 0, 0)),
        pl.BlockSpec((bb, N * N, E), lambda i: (i, 0, 0)),
        pl.BlockSpec(wn_all.shape, lambda i: (0, 0)),
        pl.BlockSpec(we_all.shape, lambda i: (0, 0)),
        pl.BlockSpec(ws_all.shape, lambda i: (0, 0)),
        pl.BlockSpec(w_num.shape, lambda i: (0, 0)),
        pl.BlockSpec(b_all.shape, lambda i: (0, 0)),
    ]
    out_specs = [
        pl.BlockSpec((bb, N, F), lambda i: (i, 0, 0)),
        pl.BlockSpec((bb, N * N, E), lambda i: (i, 0, 0)),
    ]
    out_shape = (
        jax.ShapeDtypeStruct((B, N, F), jnp.float32),
        jax.ShapeDtypeStruct((B, N * N, E), jnp.float32),
    )

    node_out, edge_out_flat = pl.pallas_call(
        gnn_layer_kernel,
        out_shape=out_shape,
        grid_spec=pltpu.PrefetchScalarGridSpec(
            num_scalar_prefetch=0,
            grid=(B // bb,),
            in_specs=in_specs,
            out_specs=out_specs,
        ),
        # Residual updates: alias node/edge inputs to the outputs so XLA can
        # write node+dnode / edge+dedge back in place (no extra HBM buffer).
        input_output_aliases={0: 0, 1: 1},
        compiler_params=pltpu.CompilerParams(
            dimension_semantics=("parallel",)),
    )(node_features, edge_flat, wn_all, we_all, ws_all, w_num, b_all)

    return node_out, edge_out_flat.reshape(B, N, N, E)


# ---------------------------------------------------------------------------
# Pure-JAX reference (mirrors the PyTorch forward with concat weights)
# ---------------------------------------------------------------------------
def gnn_layer_reference(node, edge, params):
    B, N, F = node.shape
    S = params["b_sh"].shape[-1]
    self_rep = jnp.broadcast_to(node[:, :, None, :], (B, N, N, F))
    nbr_rep = jnp.broadcast_to(node[:, None, :, :], (B, N, N, F))
    msg_in = jnp.concatenate([self_rep, nbr_rep, edge], axis=3)
    messages_all = jax.nn.relu(msg_in @ params["W_msg"] + params["b_msg"][0])
    message = jnp.mean(messages_all, axis=2)
    new_node = (jnp.concatenate([message, node], axis=2) @ params["W_nu"]
                + params["b_nu"][0])
    shrink = node @ params["W_sh"] + params["b_sh"][0]
    s_self = jnp.broadcast_to(shrink[:, :, None, :], (B, N, N, S))
    s_nbr = jnp.broadcast_to(shrink[:, None, :, :], (B, N, N, S))
    edge_in = jnp.concatenate([s_self, s_nbr, edge], axis=3)
    new_edge = edge_in @ params["W_eu"] + params["b_eu"][0]
    mask = (edge > 0).astype(jnp.float32)
    new_edge = new_edge * mask
    return node + new_node, edge + new_edge


# ---------------------------------------------------------------------------
# Deterministic parameter init (PyTorch nn.Linear-style uniform bounds)
# ---------------------------------------------------------------------------
def init_params(key, F, E, M, S):
    def linear(k, fan_in, fan_out):
        kw, kb = jax.random.split(k)
        bound = 1.0 / math.sqrt(fan_in)
        w = jax.random.uniform(kw, (fan_in, fan_out), jnp.float32, -bound, bound)
        b = jax.random.uniform(kb, (1, fan_out), jnp.float32, -bound, bound)
        return w, b

    k1, k2, k3, k4 = jax.random.split(key, 4)
    W_msg, b_msg = linear(k1, 2 * F + E, M)   # message_gen_network
    W_nu, b_nu = linear(k2, M + F, F)         # node_update_network
    W_sh, b_sh = linear(k3, F, S)             # node_shrink_layer
    W_eu, b_eu = linear(k4, 2 * S + E, E)     # edge_update_network
    return dict(W_msg=W_msg, b_msg=b_msg, W_nu=W_nu, b_nu=b_nu,
                W_sh=W_sh, b_sh=b_sh, W_eu=W_eu, b_eu=b_eu)


if __name__ == "__main__":
    B, N = 2, 8
    F, E, M, S = 32, 8, 16, 8   # node_feat_dim, edge_feat_dim, message_len, shrink_dim

    key = jax.random.PRNGKey(0)
    k_node, k_edge, k_params = jax.random.split(key, 3)
    node_features = jax.random.normal(k_node, (B, N, F), jnp.float32)
    edge_features = jax.random.normal(k_edge, (B, N, N, E), jnp.float32)
    params = init_params(k_params, F, E, M, S)

    # Reference first (kernel keeps f32, tolerances unchanged).
    node_ref, edge_ref = gnn_layer_reference(node_features, edge_features, params)

    node_out, edge_out = gnn_layer(node_features, edge_features, params)
    jax.block_until_ready((node_out, edge_out))

    np.testing.assert_allclose(np.asarray(node_out), np.asarray(node_ref),
                               rtol=1e-4, atol=1e-4)
    np.testing.assert_allclose(np.asarray(edge_out), np.asarray(edge_ref),
                               rtol=1e-4, atol=1e-4)
    print("KERNEL_OK")
</pallas_src>

<mosaic_0001>
module attributes {stable_mosaic.version = 11 : i64} {
  func.func @gnn_layer_kernel(%arg0: i32, %arg1: memref<1x8x32xf32, #tpu.memory_space<vmem>>, %arg2: memref<1x64x8xf32, #tpu.memory_space<vmem>>, %arg3: memref<32x72xf32, #tpu.memory_space<vmem>>, %arg4: memref<8x24xf32, #tpu.memory_space<vmem>>, %arg5: memref<8x16xf32, #tpu.memory_space<vmem>>, %arg6: memref<16x32xf32, #tpu.memory_space<vmem>>, %arg7: memref<1x64xf32, #tpu.memory_space<vmem>>, %arg8: memref<1x8x32xf32, #tpu.memory_space<vmem>>, %arg9: memref<1x64x8xf32, #tpu.memory_space<vmem>>) attributes {dimension_semantics = [#tpu.dimension_semantics<parallel>], iteration_bounds = array<i64: 2>, scalar_prefetch = 0 : i64, scratch_operands = 0 : i64, tpu.core_type = #tpu.core_type<tc>, window_params = [{transform_indices = @transform_0, window_bounds = array<i64: 1, 8, 32>}, {transform_indices = @transform_1, window_bounds = array<i64: 1, 64, 8>}, {pipeline_mode = #tpu.pipeline_mode<synchronous>, transform_indices = @transform_2, window_bounds = array<i64: 32, 72>}, {pipeline_mode = #tpu.pipeline_mode<synchronous>, transform_indices = @transform_3, window_bounds = array<i64: 8, 24>}, {pipeline_mode = #tpu.pipeline_mode<synchronous>, transform_indices = @transform_4, window_bounds = array<i64: 8, 16>}, {pipeline_mode = #tpu.pipeline_mode<synchronous>, transform_indices = @transform_5, window_bounds = array<i64: 16, 32>}, {pipeline_mode = #tpu.pipeline_mode<synchronous>, transform_indices = @transform_6, window_bounds = array<i64: 1, 64>}, {transform_indices = @transform_7, window_bounds = array<i64: 1, 8, 32>}, {transform_indices = @transform_8, window_bounds = array<i64: 1, 64, 8>}]} {
    %c0 = arith.constant 0 : index
    %c0_0 = arith.constant 0 : index
    %c0_1 = arith.constant 0 : index
    %0 = vector.load %arg1[%c0, %c0_0, %c0_1] : memref<1x8x32xf32, #tpu.memory_space<vmem>>, vector<1x8x32xf32>
    %c0_2 = arith.constant 0 : index
    %c0_3 = arith.constant 0 : index
    %c0_4 = arith.constant 0 : index
    %1 = vector.load %arg2[%c0_2, %c0_3, %c0_4] : memref<1x64x8xf32, #tpu.memory_space<vmem>>, vector<1x64x8xf32>
    %2 = vector.shape_cast %0 : vector<1x8x32xf32> to vector<8x32xf32>
    %3 = vector.shape_cast %1 : vector<1x64x8xf32> to vector<64x8xf32>
    %c0_5 = arith.constant 0 : index
    %c0_6 = arith.constant 0 : index
    %4 = vector.load %arg7[%c0_5, %c0_6] : memref<1x64xf32, #tpu.memory_space<vmem>>, vector<1x64xf32>
    %5 = vector.shape_cast %4 : vector<1x64xf32> to vector<64xf32>
    %6 = vector.extract_strided_slice %5 {offsets = [0], sizes = [16], strides = [1]} : vector<64xf32> to vector<16xf32>
    %7 = vector.extract_strided_slice %5 {offsets = [16], sizes = [32], strides = [1]} : vector<64xf32> to vector<32xf32>
    %8 = vector.extract_strided_slice %5 {offsets = [48], sizes = [8], strides = [1]} : vector<64xf32> to vector<8xf32>
    %9 = vector.extract_strided_slice %5 {offsets = [56], sizes = [8], strides = [1]} : vector<64xf32> to vector<8xf32>
    %c0_7 = arith.constant 0 : index
    %c0_8 = arith.constant 0 : index
    %10 = vector.load %arg3[%c0_7, %c0_8] : memref<32x72xf32, #tpu.memory_space<vmem>>, vector<32x72xf32>
    %cst = arith.constant dense<0.000000e+00> : vector<8x72xf32>
    %11 = tpu.matmul %2, %10, %cst {dimension_numbers = #tpu.dot_dimension_numbers<[1], [0], [0], [1], [0, 0, 1, 1], [], []>} : vector<8x32xf32>, vector<32x72xf32>, vector<8x72xf32> -> vector<8x72xf32>
    %12 = vector.extract_strided_slice %11 {offsets = [0, 0], sizes = [8, 16], strides = [1, 1]} : vector<8x72xf32> to vector<8x16xf32>
    %13 = vector.shape_cast %12 : vector<8x16xf32> to vector<1x8x16xf32>
    %14 = vector.extract_strided_slice %11 {offsets = [0, 16], sizes = [8, 16], strides = [1, 1]} : vector<8x72xf32> to vector<8x16xf32>
    %15 = vector.shape_cast %14 : vector<8x16xf32> to vector<1x8x16xf32>
    %16 = vector.extract_strided_slice %11 {offsets = [0, 32], sizes = [8, 32], strides = [1, 1]} : vector<8x72xf32> to vector<8x32xf32>
    %17 = vector.extract_strided_slice %11 {offsets = [0, 64], sizes = [8, 8], strides = [1, 1]} : vector<8x72xf32> to vector<8x8xf32>
    %18 = vector.shape_cast %8 : vector<8xf32> to vector<1x8xf32>
    %19 = vector.broadcast %18 : vector<1x8xf32> to vector<8x8xf32>
    %20 = arith.addf %17, %19 : vector<8x8xf32>
    %c0_9 = arith.constant 0 : index
    %c0_10 = arith.constant 0 : index
    %21 = vector.load %arg4[%c0_9, %c0_10] : memref<8x24xf32, #tpu.memory_space<vmem>>, vector<8x24xf32>
    %cst_11 = arith.constant dense<0.000000e+00> : vector<64x24xf32>
    %22 = tpu.matmul %3, %21, %cst_11 {dimension_numbers = #tpu.dot_dimension_numbers<[1], [0], [0], [1], [0, 0, 1, 1], [], []>} : vector<64x8xf32>, vector<8x24xf32>, vector<64x24xf32> -> vector<64x24xf32>
    %23 = vector.extract_strided_slice %22 {offsets = [0, 0], sizes = [64, 16], strides = [1, 1]} : vector<64x24xf32> to vector<64x16xf32>
    %24 = vector.shape_cast %23 : vector<64x16xf32> to vector<1x8x8x16xf32>
    %25 = vector.extract_strided_slice %22 {offsets = [0, 16], sizes = [64, 8], strides = [1, 1]} : vector<64x24xf32> to vector<64x8xf32>
    %26 = vector.shape_cast %25 : vector<64x8xf32> to vector<1x8x8x8xf32>
    %27 = vector.shape_cast %13 : vector<1x8x16xf32> to vector<1x8x1x16xf32>
    %28 = vector.shape_cast %15 : vector<1x8x16xf32> to vector<1x1x8x16xf32>
    %29 = vector.broadcast %27 : vector<1x8x1x16xf32> to vector<1x8x8x16xf32>
    %30 = vector.broadcast %28 : vector<1x1x8x16xf32> to vector<1x8x8x16xf32>
    %31 = arith.addf %29, %30 : vector<1x8x8x16xf32>
    %32 = arith.addf %31, %24 : vector<1x8x8x16xf32>
    %33 = vector.shape_cast %6 : vector<16xf32> to vector<1x1x1x16xf32>
    %34 = vector.broadcast %33 : vector<1x1x1x16xf32> to vector<1x8x8x16xf32>
    %35 = arith.addf %32, %34 : vector<1x8x8x16xf32>
    %cst_12 = arith.constant 0.000000e+00 : f32
    %36 = vector.broadcast %cst_12 : f32 to vector<1x8x8x16xf32>
    %37 = arith.maximumf %35, %36 : vector<1x8x8x16xf32>
    %cst_13 = arith.constant dense<0.000000e+00> : vector<1x8x16xf32>
    %38 = vector.multi_reduction <add>, %37, %cst_13 [2] : vector<1x8x8x16xf32> to vector<1x8x16xf32>
    %cst_14 = arith.constant 1.250000e-01 : f32
    %39 = vector.broadcast %cst_14 : f32 to vector<1x8x16xf32>
    %40 = arith.mulf %38, %39 : vector<1x8x16xf32>
    %41 = vector.shape_cast %40 : vector<1x8x16xf32> to vector<8x16xf32>
    %c0_15 = arith.constant 0 : index
    %c0_16 = arith.constant 0 : index
    %42 = vector.load %arg6[%c0_15, %c0_16] : memref<16x32xf32, #tpu.memory_space<vmem>>, vector<16x32xf32>
    %cst_17 = arith.constant dense<0.000000e+00> : vector<8x32xf32>
    %43 = tpu.matmul %41, %42, %cst_17 {dimension_numbers = #tpu.dot_dimension_numbers<[1], [0], [0], [1], [0, 0, 1, 1], [], []>} : vector<8x16xf32>, vector<16x32xf32>, vector<8x32xf32> -> vector<8x32xf32>
    %44 = arith.addf %43, %16 : vector<8x32xf32>
    %45 = vector.shape_cast %7 : vector<32xf32> to vector<1x32xf32>
    %46 = vector.broadcast %45 : vector<1x32xf32> to vector<8x32xf32>
    %47 = arith.addf %44, %46 : vector<8x32xf32>
    %48 = vector.shape_cast %47 : vector<8x32xf32> to vector<1x8x32xf32>
    %49 = arith.addf %0, %48 : vector<1x8x32xf32>
    %c0_18 = arith.constant 0 : index
    %c0_19 = arith.constant 0 : index
    %c0_20 = arith.constant 0 : index
    %50 = vector.load %arg8[%c0_18, %c0_19, %c0_20] : memref<1x8x32xf32, #tpu.memory_space<vmem>>, vector<1x8x32xf32>
    tpu.vector_store %arg8[%c0_18, %c0_19, %c0_20], %49 {strides = array<i32>} : memref<1x8x32xf32, #tpu.memory_space<vmem>>, vector<1x8x32xf32>,
    %c0_21 = arith.constant 0 : index
    %c0_22 = arith.constant 0 : index
    %51 = vector.load %arg5[%c0_21, %c0_22] : memref<8x16xf32, #tpu.memory_space<vmem>>, vector<8x16xf32>
    %cst_23 = arith.constant dense<0.000000e+00> : vector<8x16xf32>
    %52 = tpu.matmul %20, %51, %cst_23 {dimension_numbers = #tpu.dot_dimension_numbers<[1], [0], [0], [1], [0, 0, 1, 1], [], []>} : vector<8x8xf32>, vector<8x16xf32>, vector<8x16xf32> -> vector<8x16xf32>
    %53 = vector.extract_strided_slice %52 {offsets = [0, 0], sizes = [8, 8], strides = [1, 1]} : vector<8x16xf32> to vector<8x8xf32>
    %54 = vector.shape_cast %53 : vector<8x8xf32> to vector<1x8x8xf32>
    %55 = vector.extract_strided_slice %52 {offsets = [0, 8], sizes = [8, 8], strides = [1, 1]} : vector<8x16xf32> to vector<8x8xf32>
    %56 = vector.shape_cast %55 : vector<8x8xf32> to vector<1x8x8xf32>
    %57 = vector.shape_cast %54 : vector<1x8x8xf32> to vector<1x8x1x8xf32>
    %58 = vector.shape_cast %56 : vector<1x8x8xf32> to vector<1x1x8x8xf32>
    %59 = vector.broadcast %57 : vector<1x8x1x8xf32> to vector<1x8x8x8xf32>
    %60 = vector.broadcast %58 : vector<1x1x8x8xf32> to vector<1x8x8x8xf32>
    %61 = arith.addf %59, %60 : vector<1x8x8x8xf32>
    %62 = arith.addf %61, %26 : vector<1x8x8x8xf32>
    %63 = vector.shape_cast %9 : vector<8xf32> to vector<1x1x1x8xf32>
    %64 = vector.broadcast %63 : vector<1x1x1x8xf32> to vector<1x8x8x8xf32>
    %65 = arith.addf %62, %64 : vector<1x8x8x8xf32>
    %66 = vector.shape_cast %65 : vector<1x8x8x8xf32> to vector<1x64x8xf32>
    %cst_24 = arith.constant 0.000000e+00 : f32
    %67 = vector.broadcast %cst_24 : f32 to vector<1x64x8xf32>
    %68 = arith.cmpf ogt, %1, %67 : vector<1x64x8xf32>
    %cst_25 = arith.constant 0.000000e+00 : f32
    %69 = vector.broadcast %cst_25 : f32 to vector<1x64x8xf32>
    %70 = arith.select %68, %66, %69 : vector<1x64x8xi1>, vector<1x64x8xf32>
    %71 = arith.addf %1, %70 : vector<1x64x8xf32>
    %c0_26 = arith.constant 0 : index
    %c0_27 = arith.constant 0 : index
    %c0_28 = arith.constant 0 : index
    %72 = vector.load %arg9[%c0_26, %c0_27, %c0_28] : memref<1x64x8xf32, #tpu.memory_space<vmem>>, vector<1x64x8xf32>
    tpu.vector_store %arg9[%c0_26, %c0_27, %c0_28], %71 {strides = array<i32>} : memref<1x64x8xf32, #tpu.memory_space<vmem>>, vector<1x64x8xf32>,
    return
  }
  func.func @transform_0(%arg0: i32) -> (i32, i32, i32) {
    %c0_i32 = arith.constant 0 : i32
    %c0_i32_0 = arith.constant 0 : i32
    %c0_i32_1 = arith.constant 0 : i32
    return %arg0, %c0_i32, %c0_i32_0 : i32, i32, i32
  }
  func.func @transform_1(%arg0: i32) -> (i32, i32, i32) {
    %c0_i32 = arith.constant 0 : i32
    %c0_i32_0 = arith.constant 0 : i32
    %c0_i32_1 = arith.constant 0 : i32
    return %arg0, %c0_i32, %c0_i32_0 : i32, i32, i32
  }
  func.func @transform_2(%arg0: i32) -> (i32, i32) {
    %c0_i32 = arith.constant 0 : i32
    %c0_i32_0 = arith.constant 0 : i32
    %c0_i32_1 = arith.constant 0 : i32
    return %c0_i32, %c0_i32_0 : i32, i32
  }
  func.func @transform_3(%arg0: i32) -> (i32, i32) {
    %c0_i32 = arith.constant 0 : i32
    %c0_i32_0 = arith.constant 0 : i32
    %c0_i32_1 = arith.constant 0 : i32
    return %c0_i32, %c0_i32_0 : i32, i32
  }
  func.func @transform_4(%arg0: i32) -> (i32, i32) {
    %c0_i32 = arith.constant 0 : i32
    %c0_i32_0 = arith.constant 0 : i32
    %c0_i32_1 = arith.constant 0 : i32
    return %c0_i32, %c0_i32_0 : i32, i32
  }
  func.func @transform_5(%arg0: i32) -> (i32, i32) {
    %c0_i32 = arith.constant 0 : i32
    %c0_i32_0 = arith.constant 0 : i32
    %c0_i32_1 = arith.constant 0 : i32
    return %c0_i32, %c0_i32_0 : i32, i32
  }
  func.func @transform_6(%arg0: i32) -> (i32, i32) {
    %c0_i32 = arith.constant 0 : i32
    %c0_i32_0 = arith.constant 0 : i32
    %c0_i32_1 = arith.constant 0 : i32
    return %c0_i32, %c0_i32_0 : i32, i32
  }
  func.func @transform_7(%arg0: i32) -> (i32, i32, i32) {
    %c0_i32 = arith.constant 0 : i32
    %c0_i32_0 = arith.constant 0 : i32
    %c0_i32_1 = arith.constant 0 : i32
    return %arg0, %c0_i32, %c0_i32_0 : i32, i32, i32
  }
  func.func @transform_8(%arg0: i32) -> (i32, i32, i32) {
    %c0_i32 = arith.constant 0 : i32
    %c0_i32_0 = arith.constant 0 : i32
    %c0_i32_1 = arith.constant 0 : i32
    return %arg0, %c0_i32, %c0_i32_0 : i32, i32, i32
  }
}

</mosaic_0001>

<llo_original>
// kernel: gnn_layer.1
$region0: #{gnn_layer.1}
  #allocation0 [shape = 'u32[]', space=smem, size = 0x4, offset = 0x4, fixed_abs, tag = 'smem constant byte address 0x4 - core index']
  #allocation1 [shape = 'u32[144,128]{1,0:T(1,128)}', space=vmem, size = 0x12000, scoped, tag = 'internal scratch']
  %s0 = inlined_call_operand.vmem [shape: f32[2,8,32], index: 0, kind: input, shape index: {}, may-alias: {0,7}]
  %s1 = inlined_call_operand.vmem [shape: f32[2,64,8], index: 1, kind: input, shape index: {}, may-alias: {1,8}]
  %s2 = inlined_call_operand.vmem [shape: f32[32,72], index: 2, kind: input, shape index: {}]
  %s3 = inlined_call_operand.vmem [shape: f32[8,24], index: 3, kind: input, shape index: {}]
  %s4 = inlined_call_operand.vmem [shape: f32[8,16], index: 4, kind: input, shape index: {}]
  %s5 = inlined_call_operand.vmem [shape: f32[16,32], index: 5, kind: input, shape index: {}]
  %s6 = inlined_call_operand.vmem [shape: f32[1,64], index: 6, kind: input, shape index: {}]
  %s7 = inlined_call_operand.vmem [shape: f32[2,8,32], index: 7, kind: output, shape index: {0}, may-alias: {0,7}]
  %s8 = inlined_call_operand.vmem [shape: f32[2,64,8], index: 8, kind: output, shape index: {1}, may-alias: {1,8}]
  %9 = xla_tuple %s7, %s8
  %s10 = sld [smem:[#allocation0]]
  $region69: #{gnn_layer.1} parent=0
    _
  %s12 = ssub.s32 1, %s10
  %s13 = scalar_select 0, %s12, %s10
  loop: start=0, step=1, limit=4
  $region2: #{gnn_layer.1} parent=0 // loop_pre_header
    _
  $region3: #{gnn_layer.1} parent=0 // loop_header
    %s15 = sphi 0, %s19
    %p16 = scmp.ge.s32.totalorder %s15, 4
    %s25 = sphi 0, %s27
    %s28 = sphi 0, %s25
    %s29 = sphi 0, %s28
    %s45 = sphi 0, %s29
    %s51 = sphi 0, %s53
    %s54 = sphi 0, %s51
    %s55 = sphi 0, %s54
    %s71 = sphi 0, %s55
    %s75 = sphi 0, %s75
    %s77 = sphi 0, %s75
    %s78 = sphi 0, %s77
    %s92 = sphi 0, %s78
    %s96 = sphi 0, %s96
    %s98 = sphi 0, %s96
    %s99 = sphi 0, %s98
    %s113 = sphi 0, %s99
    %s117 = sphi 0, %s117
    %s119 = sphi 0, %s117
    %s120 = sphi 0, %s119
    %s134 = sphi 0, %s120
    %s138 = sphi 0, %s138
    %s140 = sphi 0, %s138
    %s141 = sphi 0, %s140
    %s155 = sphi 0, %s141
    %s159 = sphi 0, %s159
    %s161 = sphi 0, %s159
    %s162 = sphi 0, %s161
    %s176 = sphi 0, %s162
    %s182 = sphi 0, %s184
    %s185 = sphi 0, %s182
    %s186 = sphi 0, %s185
    %s202 = sphi 0, %s186
    %s208 = sphi 0, %s210
    %s211 = sphi 0, %s208
    %s212 = sphi 0, %s211
    %s228 = sphi 0, %s212
  $region4: #{gnn_layer.1} parent=0 // loop_header_branch
    %18 = sbr.rel (%p16) target = $region8
  $region5: #{gnn_layer.1} parent=0 // loop_body
    %s20 = ssub.s32 %s15, 1
    %s21 = ssub.s32 %s15, 2
    %s22 = sadd.s32 %s15, 1
    %s23 = ssub.s32 %s15, %s22
    %p24 = scmp.eq.s32.totalorder %s23, 0
    %s26 = sadd.s32 %s25, 1
    %s27 = scalar_select %p24, %s25, %s26
    %p30 = pneg %p24
    %p31 = scmp.eq.s32.totalorder %s15, 1
    %p32 = por %p30, %p31
    %p33 = scmp.ne.s32.totalorder %s25, %s28
    %p34 = scmp.eq.s32.totalorder %s15, 0
    %p35 = por %p33, %p34
    %p36 = scmp.ne.s32.totalorder %s25, %s28
    %p37 = scmp.eq.s32.totalorder %s20, 1
    %p38 = por %p36, %p37
    %p39 = scmp.ne.s32.totalorder %s28, %s29
    %p40 = scmp.eq.s32.totalorder %s20, 0
    %p41 = por %p39, %p40
    %p42 = scmp.ne.s32.totalorder %s28, %s29
    %p43 = scmp.eq.s32.totalorder %s21, 1
    %p44 = por %p42, %p43
    %p46 = scmp.ne.s32.totalorder %s29, %s45
    %p47 = scmp.eq.s32.totalorder %s21, 0
    %p48 = por %p46, %p47
    %s49 = ssub.s32 %s15, %s22
    %p50 = scmp.eq.s32.totalorder %s49, 0
    %s52 = sadd.s32 %s51, 1
    %s53 = scalar_select %p50, %s51, %s52
    %p56 = pneg %p50
    %p57 = scmp.eq.s32.totalorder %s15, 1
    %p58 = por %p56, %p57
    %p59 = scmp.ne.s32.totalorder %s51, %s54
    %p60 = scmp.eq.s32.totalorder %s15, 0
    %p61 = por %p59, %p60
    %p62 = scmp.ne.s32.totalorder %s51, %s54
    %p63 = scmp.eq.s32.totalorder %s20, 1
    %p64 = por %p62, %p63
    %p65 = scmp.ne.s32.totalorder %s54, %s55
    %p66 = scmp.eq.s32.totalorder %s20, 0
    %p67 = por %p65, %p66
    %p68 = scmp.ne.s32.totalorder %s54, %s55
    %p69 = scmp.eq.s32.totalorder %s21, 1
    %p70 = por %p68, %p69
    %p72 = scmp.ne.s32.totalorder %s55, %s71
    %p73 = scmp.eq.s32.totalorder %s21, 0
    %p74 = por %p72, %p73
    %s76 = sadd.s32 %s75, 1
    %p79 = scmp.eq.s32.totalorder %s15, 1
    %p80 = scmp.ne.s32.totalorder %s75, %s77
    %p81 = scmp.eq.s32.totalorder %s15, 0
    %p82 = por %p80, %p81
    %p83 = scmp.ne.s32.totalorder %s75, %s77
    %p84 = scmp.eq.s32.totalorder %s20, 1
    %p85 = por %p83, %p84
    %p86 = scmp.ne.s32.totalorder %s77, %s78
    %p87 = scmp.eq.s32.totalorder %s20, 0
    %p88 = por %p86, %p87
    %p89 = scmp.ne.s32.totalorder %s77, %s78
    %p90 = scmp.eq.s32.totalorder %s21, 1
    %p91 = por %p89, %p90
    %p93 = scmp.ne.s32.totalorder %s78, %s92
    %p94 = scmp.eq.s32.totalorder %s21, 0
    %p95 = por %p93, %p94
    %s97 = sadd.s32 %s96, 1
    %p100 = scmp.eq.s32.totalorder %s15, 1
    %p101 = scmp.ne.s32.totalorder %s96, %s98
    %p102 = scmp.eq.s32.totalorder %s15, 0
    %p103 = por %p101, %p102
    %p104 = scmp.ne.s32.totalorder %s96, %s98
    %p105 = scmp.eq.s32.totalorder %s20, 1
    %p106 = por %p104, %p105
    %p107 = scmp.ne.s32.totalorder %s98, %s99
    %p108 = scmp.eq.s32.totalorder %s20, 0
    %p109 = por %p107, %p108
    %p110 = scmp.ne.s32.totalorder %s98, %s99
    %p111 = scmp.eq.s32.totalorder %s21, 1
    %p112 = por %p110, %p111
    %p114 = scmp.ne.s32.totalorder %s99, %s113
    %p115 = scmp.eq.s32.totalorder %s21, 0
    %p116 = por %p114, %p115
    %s118 = sadd.s32 %s117, 1
    %p121 = scmp.eq.s32.totalorder %s15, 1
    %p122 = scmp.ne.s32.totalorder %s117, %s119
    %p123 = scmp.eq.s32.totalorder %s15, 0
    %p124 = por %p122, %p123
    %p125 = scmp.ne.s32.totalorder %s117, %s119
    %p126 = scmp.eq.s32.totalorder %s20, 1
    %p127 = por %p125, %p126
    %p128 = scmp.ne.s32.totalorder %s119, %s120
    %p129 = scmp.eq.s32.totalorder %s20, 0
    %p130 = por %p128, %p129
    %p131 = scmp.ne.s32.totalorder %s119, %s120
    %p132 = scmp.eq.s32.totalorder %s21, 1
    %p133 = por %p131, %p132
    %p135 = scmp.ne.s32.totalorder %s120, %s134
    %p136 = scmp.eq.s32.totalorder %s21, 0
    %p137 = por %p135, %p136
    %s139 = sadd.s32 %s138, 1
    %p142 = scmp.eq.s32.totalorder %s15, 1
    %p143 = scmp.ne.s32.totalorder %s138, %s140
    %p144 = scmp.eq.s32.totalorder %s15, 0
    %p145 = por %p143, %p144
    %p146 = scmp.ne.s32.totalorder %s138, %s140
    %p147 = scmp.eq.s32.totalorder %s20, 1
    %p148 = por %p146, %p147
    %p149 = scmp.ne.s32.totalorder %s140, %s141
    %p150 = scmp.eq.s32.totalorder %s20, 0
    %p151 = por %p149, %p150
    %p152 = scmp.ne.s32.totalorder %s140, %s141
    %p153 = scmp.eq.s32.totalorder %s21, 1
    %p154 = por %p152, %p153
    %p156 = scmp.ne.s32.totalorder %s141, %s155
    %p157 = scmp.eq.s32.totalorder %s21, 0
    %p158 = por %p156, %p157
    %s160 = sadd.s32 %s159, 1
    %p163 = scmp.eq.s32.totalorder %s15, 1
    %p164 = scmp.ne.s32.totalorder %s159, %s161
    %p165 = scmp.eq.s32.totalorder %s15, 0
    %p166 = por %p164, %p165
    %p167 = scmp.ne.s32.totalorder %s159, %s161
    %p168 = scmp.eq.s32.totalorder %s20, 1
    %p169 = por %p167, %p168
    %p170 = scmp.ne.s32.totalorder %s161, %s162
    %p171 = scmp.eq.s32.totalorder %s20, 0
    %p172 = por %p170, %p171
    %p173 = scmp.ne.s32.totalorder %s161, %s162
    %p174 = scmp.eq.s32.totalorder %s21, 1
    %p175 = por %p173, %p174
    %p177 = scmp.ne.s32.totalorder %s162, %s176
    %p178 = scmp.eq.s32.totalorder %s21, 0
    %p179 = por %p177, %p178
    %s180 = ssub.s32 %s15, %s22
    %p181 = scmp.eq.s32.totalorder %s180, 0
    %s183 = sadd.s32 %s182, 1
    %s184 = scalar_select %p181, %s182, %s183
    %p187 = pneg %p181
    %p188 = scmp.eq.s32.totalorder %s15, 1
    %p189 = por %p187, %p188
    %p190 = scmp.ne.s32.totalorder %s182, %s185
    %p191 = scmp.eq.s32.totalorder %s15, 0
    %p192 = por %p190, %p191
    %p193 = scmp.ne.s32.totalorder %s182, %s185
    %p194 = scmp.eq.s32.totalorder %s20, 1
    %p195 = por %p193, %p194
    %p196 = scmp.ne.s32.totalorder %s185, %s186
    %p197 = scmp.eq.s32.totalorder %s20, 0
    %p198 = por %p196, %p197
    %p199 = scmp.ne.s32.totalorder %s185, %s186
    %p200 = scmp.eq.s32.totalorder %s21, 1
    %p201 = por %p199, %p200
    %p203 = scmp.ne.s32.totalorder %s186, %s202
    %p204 = scmp.eq.s32.totalorder %s21, 0
    %p205 = por %p203, %p204
    %s206 = ssub.s32 %s15, %s22
    %p207 = scmp.eq.s32.totalorder %s206, 0
    %s209 = sadd.s32 %s208, 1
    %s210 = scalar_select %p207, %s208, %s209
    %p213 = pneg %p207
    %p214 = scmp.eq.s32.totalorder %s15, 1
    %p215 = por %p213, %p214
    %p216 = scmp.ne.s32.totalorder %s208, %s211
    %p217 = scmp.eq.s32.totalorder %s15, 0
    %p218 = por %p216, %p217
    %p219 = scmp.ne.s32.totalorder %s208, %s211
    %p220 = scmp.eq.s32.totalorder %s20, 1
    %p221 = por %p219, %p220
    %p222 = scmp.ne.s32.totalorder %s211, %s212
    %p223 = scmp.eq.s32.totalorder %s20, 0
    %p224 = por %p222, %p223
    %p225 = scmp.ne.s32.totalorder %s211, %s212
    %p226 = scmp.eq.s32.totalorder %s21, 1
    %p227 = por %p225, %p226
    %p229 = scmp.ne.s32.totalorder %s212, %s228
    %p230 = scmp.eq.s32.totalorder %s21, 0
    %p231 = por %p229, %p230
    %p232 = scmp.le.s32.totalorder 1, %s15
    %p233 = scmp.lt.s32.totalorder %s15, 3
    %p234 = pnand %p232, %p233
    %p235 = pneg %p234
    // Predicated region
    $region9: #{gnn_layer.1} parent=5 // pred_check
      _
    $region10: #{gnn_layer.1} parent=5 // pred_check_branch
      %237 = sbr.rel (%p234) target = $region12
    $region11: #{gnn_layer.1} parent=5 // pred_region
      %s238 = ssub.s32 %s15, 1
      // Predicated region
      $region13: #{gnn_layer.1} parent=11 // pred_check
        %p239 = pneg %p88
      $region14: #{gnn_layer.1} parent=11 // pred_check_branch
        %241 = sbr.rel (%p239) target = $region16
      $region15: #{gnn_layer.1} parent=11 // pred_region
        _
      $region16: #{gnn_layer.1} parent=11 // pred_fallthru
        _
      // Predicated region
      $region17: #{gnn_layer.1} parent=11 // pred_check
        %p242 = pneg %p109
      $region18: #{gnn_layer.1} parent=11 // pred_check_branch
        %244 = sbr.rel (%p242) target = $region20
      $region19: #{gnn_layer.1} parent=11 // pred_region
        _
      $region20: #{gnn_layer.1} parent=11 // pred_fallthru
        _
      // Predicated region
      $region21: #{gnn_layer.1} parent=11 // pred_check
        %p245 = pneg %p130
      $region22: #{gnn_layer.1} parent=11 // pred_check_branch
        %247 = sbr.rel (%p245) target = $region24
      $region23: #{gnn_layer.1} parent=11 // pred_region
        _
      $region24: #{gnn_layer.1} parent=11 // pred_fallthru
        _
      // Predicated region
      $region25: #{gnn_layer.1} parent=11 // pred_check
        %p248 = pneg %p151
      $region26: #{gnn_layer.1} parent=11 // pred_check_branch
        %250 = sbr.rel (%p248) target = $region28
      $region27: #{gnn_layer.1} parent=11 // pred_region
        _
      $region28: #{gnn_layer.1} parent=11 // pred_fallthru
        _
      // Predicated region
      $region29: #{gnn_layer.1} parent=11 // pred_check
        %p251 = pneg %p172
      $region30: #{gnn_layer.1} parent=11 // pred_check_branch
        %253 = sbr.rel (%p251) target = $region32
      $region31: #{gnn_layer.1} parent=11 // pred_region
        _
      $region32: #{gnn_layer.1} parent=11 // pred_fallthru
        _
    $region12: #{gnn_layer.1} parent=5 // pred_fallthru
      _
    %p254 = scmp.lt.s32.totalorder %s15, 2
    // Predicated region
    $region33: #{gnn_layer.1} parent=5 // pred_check
      %p255 = pneg %p254
    $region34: #{gnn_layer.1} parent=5 // pred_check_branch
      %257 = sbr.rel (%p255) target = $region36
    $region35: #{gnn_layer.1} parent=5 // pred_region
      // Predicated region
      $region37: #{gnn_layer.1} parent=35 // pred_check
        %p258 = pneg %p35
      $region38: #{gnn_layer.1} parent=35 // pred_check_branch
        %260 = sbr.rel (%p258) target = $region40
      $region39: #{gnn_layer.1} parent=35 // pred_region
        %p261 = scmp.lt.s32.totalorder %s15, 1
        %s262 = scalar_select %p261, %s15, 1
        %s263 = smul.addr %s262, 8
        %s264 = scalar_lea.vmem %s0, %s263
      $region40: #{gnn_layer.1} parent=35 // pred_fallthru
        _
      // Predicated region
      $region41: #{gnn_layer.1} parent=35 // pred_check
        %p265 = pneg %p61
      $region42: #{gnn_layer.1} parent=35 // pred_check_branch
        %267 = sbr.rel (%p265) target = $region44
      $region43: #{gnn_layer.1} parent=35 // pred_region
        %p268 = scmp.lt.s32.totalorder %s15, 1
        %s269 = scalar_select %p268, %s15, 1
        %s270 = smul.addr %s269, 8
        %s271 = smul.addr %s270, 8
        %s272 = scalar_lea.vmem %s1, %s271
      $region44: #{gnn_layer.1} parent=35 // pred_fallthru
        _
    $region36: #{gnn_layer.1} parent=5 // pred_fallthru
      _
    %p273 = scmp.le.s32.totalorder 1, %s15
    %p274 = scmp.lt.s32.totalorder %s15, 3
    %p275 = pnand %p273, %p274
    %p276 = pneg %p275
    // Predicated region
    $region45: #{gnn_layer.1} parent=5 // pred_check
      _
    $region46: #{gnn_layer.1} parent=5 // pred_check_branch
      %278 = sbr.rel (%p275) target = $region48
    $region47: #{gnn_layer.1} parent=5 // pred_region
      %s279 = ssub.s32 %s15, 1
      %p280 = scmp.lt.s32.totalorder %s20, 1
      %s281 = scalar_select %p280, %s20, 1
      %s282 = smul.addr %s281, 8
      %s283 = scalar_lea.vmem %s0, %s282
      %p284 = pneg %p41
      %p285 = pneg %p38
      %p286 = scmp.lt.s32.totalorder %s20, 1
      %s287 = scalar_select %p286, %s20, 1
      %s288 = smul.addr %s287, 8
      %s289 = smul.addr %s288, 8
      %s290 = scalar_lea.vmem %s1, %s289
      %p291 = pneg %p67
      %p292 = pneg %p64
      %p293 = pneg %p88
      %p294 = pneg %p85
      %p295 = pneg %p109
      %p296 = pneg %p106
      %p297 = pneg %p130
      %p298 = pneg %p127
      %p299 = pneg %p151
      %p300 = pneg %p148
      %p301 = pneg %p172
      %p302 = pneg %p169
      %p303 = pneg %p198
      %p304 = pneg %p195
      %p305 = scmp.lt.s32.totalorder %s20, 1
      %s306 = scalar_select %p305, %s20, 1
      %s307 = smul.addr %s306, 8
      %s308 = scalar_lea.vmem %s7, %s307
      %p309 = pneg %p224
      %p310 = pneg %p221
      %p311 = scmp.lt.s32.totalorder %s20, 1
      %s312 = scalar_select %p311, %s20, 1
      %s313 = smul.addr %s312, 8
      %s314 = smul.addr %s313, 8
      %s315 = scalar_lea.vmem %s8, %s314
      %p316 = scmp.lt.s32.totalorder %s20, 1
      %s317 = scalar_select %p316, %s20, 1
      %s318 = smul.addr %s317, 8
      %s319 = scalar_lea.vmem %s0, %s318
      %p320 = scmp.lt.s32.totalorder %s20, 1
      %s321 = scalar_select %p320, %s20, 1
      %s322 = smul.addr %s321, 8
      %s323 = smul.addr %s322, 8
      %s324 = scalar_lea.vmem %s1, %s323
      %p325 = scmp.lt.s32.totalorder %s20, 1
      %s326 = scalar_select %p325, %s20, 1
      %s327 = smul.addr %s326, 8
      %s328 = scalar_lea.vmem %s7, %s327
      %p329 = scmp.lt.s32.totalorder %s20, 1
      %s330 = scalar_select %p329, %s20, 1
      %s331 = smul.addr %s330, 8
      %s332 = smul.addr %s331, 8
      %s333 = scalar_lea.vmem %s8, %s332
      %v334 = vld [vmem:[%s319] sm:$0xff]
      %v335 = vld [vmem:[%s324] sm:$0xff]
      %v336 = vld [vmem:[%s324 + $0x8] sm:$0xff]
      %v337 = vld [vmem:[%s324 + $0x10] sm:$0xff]
      %v338 = vld [vmem:[%s324 + $0x18] sm:$0xff]
      %v339 = vld [vmem:[%s324 + $0x20] sm:$0xff]
      %v340 = vld [vmem:[%s324 + $0x28] sm:$0xff]
      %v341 = vld [vmem:[%s324 + $0x30] sm:$0xff]
      %v342 = vld [vmem:[%s324 + $0x38] sm:$0xff]
      %v343 = vld [vmem:[%s6] sm:$0x1]
      %v344 = vld [vmem:[%s2] sm:$0xff]
      %v345 = vld [vmem:[%s2 + $0x8] sm:$0xff]
      %v346 = vld [vmem:[%s2 + $0x10] sm:$0xff]
      %v347 = vld [vmem:[%s2 + $0x18] sm:$0xff]
      %vm348 = vcmask 261120
      %v350 = vsel %vm348, %v334, 0
      %352 = vmatprep.subr.mxu0 0.0
      %353 = vmatpush1.msra.mxu0 %v344
      %354 = vmatprep.subr.mxu0 0.0
      %355 = vmatpush1.msra.mxu0 %v345
      %356 = vmatprep.subr.mxu0 0.0
      %357 = vmatpush1.msra.mxu0 %v346
      %358 = vmatprep.subr.mxu0 0.0
      %359 = vmatpush1.msra.mxu0 %v347
      %360 = vmatprep.subr.mxu0 0.0
      %361 = vmatpush1.msra.mxu0 0.0
      %362 = vmatprep.subr.mxu0 0.0
      %363 = vmatpush1.msra.mxu0 0.0
      %364 = vmatprep.subr.mxu0 0.0
      %365 = vmatpush1.msra.mxu0 0.0
      %366 = vmatprep.subr.mxu0 0.0
      %367 = vmatpush1.msra.mxu0 0.0
      %368 = vmatprep.subr.mxu0 0.0
      %369 = vmatpush1.msra.mxu0 0.0
      %370 = vmatprep.subr.mxu0 0.0
      %371 = vmatpush1.msra.mxu0 0.0
      %372 = vmatprep.subr.mxu0 0.0
      %373 = vmatpush1.msra.mxu0 0.0
      %374 = vmatprep.subr.mxu0 0.0
      %375 = vmatpush1.msra.mxu0 0.0
      %376 = vmatprep.subr.mxu0 0.0
      %377 = vmatpush1.msra.mxu0 0.0
      %378 = vmatprep.subr.mxu0 0.0
      %379 = vmatpush1.msra.mxu0 0.0
      %380 = vmatprep.subr.mxu0 0.0
      %381 = vmatpush1.msra.mxu0 0.0
      %382 = vmatprep.subr.mxu0 0.0
      %383 = vmatpush1.msra.mxu0 0.0
      %384 = vmatprep.subr.mxu0 0.0
      %385 = vmatpush1.msra.mxu0 0.0
      %386 = vmatprep.subr.mxu0 0.0
      %387 = vmatpush1.msra.mxu0 0.0
      %388 = vmatprep.subr.mxu0 0.0
      %389 = vmatpush1.msra.mxu0 0.0
      %390 = vmatprep.subr.mxu0 0.0
      %391 = vmatpush1.msra.mxu0 0.0
      %392 = vmatprep.subr.mxu0 0.0
      %393 = vmatpush1.msra.mxu0 0.0
      %394 = vmatprep.subr.mxu0 0.0
      %395 = vmatpush1.msra.mxu0 0.0
      %396 = vmatprep.subr.mxu0 0.0
      %397 = vmatpush1.msra.mxu0 0.0
      %398 = vmatprep.subr.mxu0 0.0
      %399 = vmatpush1.msra.mxu0 0.0
      %400 = vmatprep.subr.mxu0 0.0
      %401 = vmatpush1.msra.mxu0 0.0
      %402 = vmatprep.subr.mxu0 0.0
      %403 = vmatpush1.msra.mxu0 0.0
      %404 = vmatprep.subr.mxu0 0.0
      %405 = vmatpush1.msra.mxu0 0.0
      %406 = vmatprep.subr.mxu0 0.0
      %407 = vmatpush1.msra.mxu0 0.0
      %408 = vmatprep.subr.mxu0 0.0
      %409 = vmatpush1.msra.mxu0 0.0
      %410 = vmatprep.subr.mxu0 0.0
      %411 = vmatpush1.msra.mxu0 0.0
      %412 = vmatprep.subr.mxu0 0.0
      %413 = vmatpush1.msra.mxu0 0.0
      %414 = vmatprep.subr.mxu0 0.0
      %415 = vmatpush1.msra.mxu0 0.0
      %416 = vmatprep.mubr.f32.mxu0 0.0
      %417 = vmatmul.mubr.f32.gmra.mrb[0].mxu0 %v350
      %v418 = vpop.f32.mrb[0].mxu0
      %v419 = vadd.f32 0.0, %v418
      %v420 = vpop.f32.mrb[0].mxu0
      %421 = vdwg.mxu0
      %v423 = vlaneseq
      %v424 = vshrl.u32 %v423, 7
      %v425 = vsub.s32 0, %v424
      %v426 = vrot.slane %v343, %v425
      %427 = vrot.lane.b32.xlu0 %v426, 16
      %v428 = vpop.permute.xlu0 %427
      %v430 = vadd.f32 %v419, %v428
      %v431 = vld [vmem:[%s3] sm:$0xff]
      %vm432 = vcmask 64512
      %v434 = vsel %vm432, %v335, 0
      %v437 = vsel %vm432, %v336, 0
      %v440 = vsel %vm432, %v337, 0
      %v443 = vsel %vm432, %v338, 0
      %v446 = vsel %vm432, %v339, 0
      %v449 = vsel %vm432, %v340, 0
      %v452 = vsel %vm432, %v341, 0
      %v455 = vsel %vm432, %v342, 0
      %457 = vmatprep.subr.mxu0 0.0
      %458 = vmatpush1.msra.mxu0 %v431
      %459 = vmatprep.subr.mxu0 0.0
      %460 = vmatpush1.msra.mxu0 0.0
      %461 = vmatprep.subr.mxu0 0.0
      %462 = vmatpush1.msra.mxu0 0.0
      %463 = vmatprep.subr.mxu0 0.0
      %464 = vmatpush1.msra.mxu0 0.0
      %465 = vmatprep.subr.mxu0 0.0
      %466 = vmatpush1.msra.mxu0 0.0
      %467 = vmatprep.subr.mxu0 0.0
      %468 = vmatpush1.msra.mxu0 0.0
      %469 = vmatprep.subr.mxu0 0.0
      %470 = vmatpush1.msra.mxu0 0.0
      %471 = vmatprep.subr.mxu0 0.0
      %472 = vmatpush1.msra.mxu0 0.0
      %473 = vmatprep.subr.mxu0 0.0
      %474 = vmatpush1.msra.mxu0 0.0
      %475 = vmatprep.subr.mxu0 0.0
      %476 = vmatpush1.msra.mxu0 0.0
      %477 = vmatprep.subr.mxu0 0.0
      %478 = vmatpush1.msra.mxu0 0.0
      %479 = vmatprep.subr.mxu0 0.0
      %480 = vmatpush1.msra.mxu0 0.0
      %481 = vmatprep.subr.mxu0 0.0
      %482 = vmatpush1.msra.mxu0 0.0
      %483 = vmatprep.subr.mxu0 0.0
      %484 = vmatpush1.msra.mxu0 0.0
      %485 = vmatprep.subr.mxu0 0.0
      %486 = vmatpush1.msra.mxu0 0.0
      %487 = vmatprep.subr.mxu0 0.0
      %488 = vmatpush1.msra.mxu0 0.0
      %489 = vmatprep.subr.mxu0 0.0
      %490 = vmatpush1.msra.mxu0 0.0
      %491 = vmatprep.subr.mxu0 0.0
      %492 = vmatpush1.msra.mxu0 0.0
      %493 = vmatprep.subr.mxu0 0.0
      %494 = vmatpush1.msra.mxu0 0.0
      %495 = vmatprep.subr.mxu0 0.0
      %496 = vmatpush1.msra.mxu0 0.0
      %497 = vmatprep.subr.mxu0 0.0
      %498 = vmatpush1.msra.mxu0 0.0
      %499 = vmatprep.subr.mxu0 0.0
      %500 = vmatpush1.msra.mxu0 0.0
      %501 = vmatprep.subr.mxu0 0.0
      %502 = vmatpush1.msra.mxu0 0.0
      %503 = vmatprep.subr.mxu0 0.0
      %504 = vmatpush1.msra.mxu0 0.0
      %505 = vmatprep.subr.mxu0 0.0
      %506 = vmatpush1.msra.mxu0 0.0
      %507 = vmatprep.subr.mxu0 0.0
      %508 = vmatpush1.msra.mxu0 0.0
      %509 = vmatprep.subr.mxu0 0.0
      %510 = vmatpush1.msra.mxu0 0.0
      %511 = vmatprep.subr.mxu0 0.0
      %512 = vmatpush1.msra.mxu0 0.0
      %513 = vmatprep.subr.mxu0 0.0
      %514 = vmatpush1.msra.mxu0 0.0
      %515 = vmatprep.subr.mxu0 0.0
      %516 = vmatpush1.msra.mxu0 0.0
      %517 = vmatprep.subr.mxu0 0.0
      %518 = vmatpush1.msra.mxu0 0.0
      %519 = vmatprep.subr.mxu0 0.0
      %520 = vmatpush1.msra.mxu0 0.0
      %521 = vmatprep.mubr.f32.mxu0 0.0
      %522 = vmatmul.mubr.f32.gmra.mrb[0].mxu0 %v434
      %v523 = vpop.f32.mrb[0].mxu0
      %v524 = vadd.f32 0.0, %v523
      %v525 = vpop.f32.mrb[0].mxu0
      %526 = vmatprep.mubr.f32.mxu0 0.0
      %527 = vmatmul.mubr.f32.gmra.mrb[0].mxu0 %v437
      %v528 = vpop.f32.mrb[0].mxu0
      %v529 = vadd.f32 0.0, %v528
      %v530 = vpop.f32.mrb[0].mxu0
      %531 = vmatprep.mubr.f32.mxu0 0.0
      %532 = vmatmul.mubr.f32.gmra.mrb[0].mxu0 %v440
      %v533 = vpop.f32.mrb[0].mxu0
      %v534 = vadd.f32 0.0, %v533
      %v535 = vpop.f32.mrb[0].mxu0
      %536 = vmatprep.mubr.f32.mxu0 0.0
      %537 = vmatmul.mubr.f32.gmra.mrb[0].mxu0 %v443
      %v538 = vpop.f32.mrb[0].mxu0
      %v539 = vadd.f32 0.0, %v538
      %v540 = vpop.f32.mrb[0].mxu0
      %541 = vmatprep.mubr.f32.mxu0 0.0
      %542 = vmatmul.mubr.f32.gmra.mrb[0].mxu0 %v446
      %v543 = vpop.f32.mrb[0].mxu0
      %v544 = vadd.f32 0.0, %v543
      %v545 = vpop.f32.mrb[0].mxu0
      %546 = vmatprep.mubr.f32.mxu0 0.0
      %547 = vmatmul.mubr.f32.gmra.mrb[0].mxu0 %v449
      %v548 = vpop.f32.mrb[0].mxu0
      %v549 = vadd.f32 0.0, %v548
      %v550 = vpop.f32.mrb[0].mxu0
      %551 = vmatprep.mubr.f32.mxu0 0.0
      %552 = vmatmul.mubr.f32.gmra.mrb[0].mxu0 %v452
      %v553 = vpop.f32.mrb[0].mxu0
      %v554 = vadd.f32 0.0, %v553
      %v555 = vpop.f32.mrb[0].mxu0
      %556 = vmatprep.mubr.f32.mxu0 0.0
      %557 = vmatmul.mubr.f32.gmra.mrb[0].mxu0 %v455
      %v558 = vpop.f32.mrb[0].mxu0
      %v559 = vadd.f32 0.0, %v558
      %v560 = vpop.f32.mrb[0].mxu0
      %561 = vdwg.mxu0
      %v563 = vcombine.high %v419, %v419
      %v565 = vunpack.c.l.s4 1966171168
      %v566 = vunpack.c.0.s8 %v565
      %v567 = vlaneseq
      %v568 = vshrl.u32 %v567, 7
      %v569 = vsub.s32 %v566, %v568
      %v570 = vrot.slane %v419, %v569
      %v572 = vunpack.c.l.s4 1966171168
      %v573 = vunpack.c.0.s8 %v572
      %v574 = vlaneseq
      %v575 = vshrl.u32 %v574, 7
      %v576 = vsub.s32 %v573, %v575
      %v577 = vrot.slane %v563, %v576
      %v578 = vcombine.high %v570, %v570
      %v579 = vcombine.high %v577, %v577
      %v581 = vunpack.c.l.s4 1966171168
      %v582 = vunpack.c.0.s8 %v581
      %v583 = vlaneseq
      %v584 = vshrl.u32 %v583, 7
      %v585 = vsub.s32 %v582, %v584
      %v586 = vrot.slane %v570, %v585
      %v588 = vunpack.c.l.s4 1966171168
      %v589 = vunpack.c.0.s8 %v588
      %v590 = vlaneseq
      %v591 = vshrl.u32 %v590, 7
      %v592 = vsub.s32 %v589, %v591
      %v593 = vrot.slane %v577, %v592
      %v595 = vunpack.c.l.s4 1966171168
      %v596 = vunpack.c.0.s8 %v595
      %v597 = vlaneseq
      %v598 = vshrl.u32 %v597, 7
      %v599 = vsub.s32 %v596, %v598
      %v600 = vrot.slane %v578, %v599
      %v602 = vunpack.c.l.s4 1966171168
      %v603 = vunpack.c.0.s8 %v602
      %v604 = vlaneseq
      %v605 = vshrl.u32 %v604, 7
      %v606 = vsub.s32 %v603, %v605
      %v607 = vrot.slane %v579, %v606
      %v608 = vcombine.high %v586, %v586
      %v609 = vcombine.high %v593, %v593
      %v610 = vcombine.high %v600, %v600
      %v611 = vcombine.high %v607, %v607
      %v612 = vlaneseq
      %v613 = vshrl.u32 %v612, 7
      %v614 = vsub.s32 0, %v613
      %v615 = vrot.slane %v586, %v614
      %v616 = vlaneseq
      %v617 = vshrl.u32 %v616, 7
      %v618 = vsub.s32 0, %v617
      %v619 = vrot.slane %v600, %v618
      %v620 = vlaneseq
      %v621 = vshrl.u32 %v620, 7
      %v622 = vsub.s32 0, %v621
      %v623 = vrot.slane %v608, %v622
      %v624 = vlaneseq
      %v625 = vshrl.u32 %v624, 7
      %v626 = vsub.s32 0, %v625
      %v627 = vrot.slane %v610, %v626
      %v628 = vlaneseq
      %v629 = vshrl.u32 %v628, 7
      %v630 = vsub.s32 0, %v629
      %v631 = vrot.slane %v593, %v630
      %v632 = vlaneseq
      %v633 = vshrl.u32 %v632, 7
      %v634 = vsub.s32 0, %v633
      %v635 = vrot.slane %v607, %v634
      %v636 = vlaneseq
      %v637 = vshrl.u32 %v636, 7
      %v638 = vsub.s32 0, %v637
      %v639 = vrot.slane %v609, %v638
      %v640 = vlaneseq
      %v641 = vshrl.u32 %v640, 7
      %v642 = vsub.s32 0, %v641
      %v643 = vrot.slane %v611, %v642
      %652 = vrot.lane.b32.xlu0 %v419, 112
      %v653 = vpop.permute.xlu0 %652
      %v655 = vadd.f32 %v615, %v653
      %v656 = vadd.f32 %v619, %v653
      %v657 = vadd.f32 %v623, %v653
      %v658 = vadd.f32 %v627, %v653
      %v659 = vadd.f32 %v631, %v653
      %v660 = vadd.f32 %v635, %v653
      %v661 = vadd.f32 %v639, %v653
      %v662 = vadd.f32 %v643, %v653
      %v663 = vadd.f32 %v655, %v524
      %v664 = vadd.f32 %v656, %v529
      %v665 = vadd.f32 %v657, %v534
      %v666 = vadd.f32 %v658, %v539
      %v667 = vadd.f32 %v659, %v544
      %v668 = vadd.f32 %v660, %v549
      %v669 = vadd.f32 %v661, %v554
      %v670 = vadd.f32 %v662, %v559
      %v672 = vadd.f32 %v663, %v426
      %v673 = vadd.f32 %v664, %v426
      %v674 = vadd.f32 %v665, %v426
      %v675 = vadd.f32 %v666, %v426
      %v676 = vadd.f32 %v667, %v426
      %v677 = vadd.f32 %v668, %v426
      %v678 = vadd.f32 %v669, %v426
      %v679 = vadd.f32 %v670, %v426
      %v680 = vmax.f32 %v672, 0.0
      %v681 = vmax.f32 %v673, 0.0
      %v682 = vmax.f32 %v674, 0.0
      %v683 = vmax.f32 %v675, 0.0
      %v684 = vmax.f32 %v676, 0.0
      %v685 = vmax.f32 %v677, 0.0
      %v686 = vmax.f32 %v678, 0.0
      %v687 = vmax.f32 %v679, 0.0
      %vm688 = vcmask 130048
      %v689 = vsel %vm688, %v680, 0.0
      %v690 = vrot.slane %v689, 4
      %v691 = vadd.f32 %v689, %v690
      %v692 = vrot.slane %v691, 2
      %v693 = vadd.f32 %v691, %v692
      %v694 = vrot.slane %v693, 1
      %v695 = vadd.f32 %v693, %v694
      %v696 = vsel %vm688, %v681, 0.0
      %v697 = vrot.slane %v696, 4
      %v698 = vadd.f32 %v696, %v697
      %v699 = vrot.slane %v698, 2
      %v700 = vadd.f32 %v698, %v699
      %v701 = vrot.slane %v700, 1
      %v702 = vadd.f32 %v700, %v701
      %v703 = vsel %vm688, %v682, 0.0
      %v704 = vrot.slane %v703, 4
      %v705 = vadd.f32 %v703, %v704
      %v706 = vrot.slane %v705, 2
      %v707 = vadd.f32 %v705, %v706
      %v708 = vrot.slane %v707, 1
      %v709 = vadd.f32 %v707, %v708
      %v710 = vsel %vm688, %v683, 0.0
      %v711 = vrot.slane %v710, 4
      %v712 = vadd.f32 %v710, %v711
      %v713 = vrot.slane %v712, 2
      %v714 = vadd.f32 %v712, %v713
      %v715 = vrot.slane %v714, 1
      %v716 = vadd.f32 %v714, %v715
      %v717 = vsel %vm688, %v684, 0.0
      %v718 = vrot.slane %v717, 4
      %v719 = vadd.f32 %v717, %v718
      %v720 = vrot.slane %v719, 2
      %v721 = vadd.f32 %v719, %v720
      %v722 = vrot.slane %v721, 1
      %v723 = vadd.f32 %v721, %v722
      %v724 = vsel %vm688, %v685, 0.0
      %v725 = vrot.slane %v724, 4
      %v726 = vadd.f32 %v724, %v725
      %v727 = vrot.slane %v726, 2
      %v728 = vadd.f32 %v726, %v727
      %v729 = vrot.slane %v728, 1
      %v730 = vadd.f32 %v728, %v729
      %v731 = vsel %vm688, %v686, 0.0
      %v732 = vrot.slane %v731, 4
      %v733 = vadd.f32 %v731, %v732
      %v734 = vrot.slane %v733, 2
      %v735 = vadd.f32 %v733, %v734
      %v736 = vrot.slane %v735, 1
      %v737 = vadd.f32 %v735, %v736
      %v738 = vsel %vm688, %v687, 0.0
      %v739 = vrot.slane %v738, 4
      %v740 = vadd.f32 %v738, %v739
      %v741 = vrot.slane %v740, 2
      %v742 = vadd.f32 %v740, %v741
      %v743 = vrot.slane %v742, 1
      %v744 = vadd.f32 %v742, %v743
      %v745 = vmul.f32 %v695, 0.125
      %v746 = vmul.f32 %v702, 0.125
      %v747 = vmul.f32 %v709, 0.125
      %v748 = vmul.f32 %v716, 0.125
      %v749 = vmul.f32 %v723, 0.125
      %v750 = vmul.f32 %v730, 0.125
      %v751 = vmul.f32 %v737, 0.125
      %v752 = vmul.f32 %v744, 0.125
      %v753 = vld [vmem:[%s5] sm:$0xff]
      %v754 = vld [vmem:[%s5 + $0x8] sm:$0xff]
      %vm763 = vcmask 1041409
      %v764 = vsel %vm763, %v746, %v745
      %vm765 = vcmask 1042434
      %v766 = vsel %vm765, %v747, %v764
      %vm767 = vcmask 1043459
      %v768 = vsel %vm767, %v748, %v766
      %vm769 = vcmask 1044484
      %v770 = vsel %vm769, %v749, %v768
      %vm771 = vcmask 1045509
      %v772 = vsel %vm771, %v750, %v770
      %vm773 = vcmask 1046534
      %v774 = vsel %vm773, %v751, %v772
      %vm775 = vcmask 1047559
      %v776 = vsel %vm775, %v752, %v774
      %777 = vrot.lane.b32.xlu0 %v419, 96
      %v778 = vpop.permute.xlu0 %777
      %v780 = vsel %vm688, %v776, 0
      %782 = vmatprep.subr.mxu0 0.0
      %783 = vmatpush1.msra.mxu0 %v753
      %784 = vmatprep.subr.mxu0 0.0
      %785 = vmatpush1.msra.mxu0 %v754
      %786 = vmatprep.subr.mxu0 0.0
      %787 = vmatpush1.msra.mxu0 0.0
      %788 = vmatprep.subr.mxu0 0.0
      %789 = vmatpush1.msra.mxu0 0.0
      %790 = vmatprep.subr.mxu0 0.0
      %791 = vmatpush1.msra.mxu0 0.0
      %792 = vmatprep.subr.mxu0 0.0
      %793 = vmatpush1.msra.mxu0 0.0
      %794 = vmatprep.subr.mxu0 0.0
      %795 = vmatpush1.msra.mxu0 0.0
      %796 = vmatprep.subr.mxu0 0.0
      %797 = vmatpush1.msra.mxu0 0.0
      %798 = vmatprep.subr.mxu0 0.0
      %799 = vmatpush1.msra.mxu0 0.0
      %800 = vmatprep.subr.mxu0 0.0
      %801 = vmatpush1.msra.mxu0 0.0
      %802 = vmatprep.subr.mxu0 0.0
      %803 = vmatpush1.msra.mxu0 0.0
      %804 = vmatprep.subr.mxu0 0.0
      %805 = vmatpush1.msra.mxu0 0.0
      %806 = vmatprep.subr.mxu0 0.0
      %807 = vmatpush1.msra.mxu0 0.0
      %808 = vmatprep.subr.mxu0 0.0
      %809 = vmatpush1.msra.mxu0 0.0
      %810 = vmatprep.subr.mxu0 0.0
      %811 = vmatpush1.msra.mxu0 0.0
      %812 = vmatprep.subr.mxu0 0.0
      %813 = vmatpush1.msra.mxu0 0.0
      %814 = vmatprep.subr.mxu0 0.0
      %815 = vmatpush1.msra.mxu0 0.0
      %816 = vmatprep.subr.mxu0 0.0
      %817 = vmatpush1.msra.mxu0 0.0
      %818 = vmatprep.subr.mxu0 0.0
      %819 = vmatpush1.msra.mxu0 0.0
      %820 = vmatprep.subr.mxu0 0.0
      %821 = vmatpush1.msra.mxu0 0.0
      %822 = vmatprep.subr.mxu0 0.0
      %823 = vmatpush1.msra.mxu0 0.0
      %824 = vmatprep.subr.mxu0 0.0
      %825 = vmatpush1.msra.mxu0 0.0
      %826 = vmatprep.subr.mxu0 0.0
      %827 = vmatpush1.msra.mxu0 0.0
      %828 = vmatprep.subr.mxu0 0.0
      %829 = vmatpush1.msra.mxu0 0.0
      %830 = vmatprep.subr.mxu0 0.0
      %831 = vmatpush1.msra.mxu0 0.0
      %832 = vmatprep.subr.mxu0 0.0
      %833 = vmatpush1.msra.mxu0 0.0
      %834 = vmatprep.subr.mxu0 0.0
      %835 = vmatpush1.msra.mxu0 0.0
      %836 = vmatprep.subr.mxu0 0.0
      %837 = vmatpush1.msra.mxu0 0.0
      %838 = vmatprep.subr.mxu0 0.0
      %839 = vmatpush1.msra.mxu0 0.0
      %840 = vmatprep.subr.mxu0 0.0
      %841 = vmatpush1.msra.mxu0 0.0
      %842 = vmatprep.subr.mxu0 0.0
      %843 = vmatpush1.msra.mxu0 0.0
      %844 = vmatprep.subr.mxu0 0.0
      %845 = vmatpush1.msra.mxu0 0.0
      %846 = vmatprep.mubr.f32.mxu0 0.0
      %847 = vmatmul.mubr.f32.gmra.mrb[0].mxu0 %v780
      %v848 = vpop.f32.mrb[0].mxu0
      %v849 = vadd.f32 %v778, %v848
      %v850 = vpop.f32.mrb[0].mxu0
      %851 = vdwg.mxu0
      %852 = vrot.lane.b32.xlu0 %v426, 112
      %v853 = vpop.permute.xlu0 %852
      %v855 = vadd.f32 %v849, %v853
      %v856 = vadd.f32 %v334, %v855
      %857 = vst.msk [vmem:[%s328] sm:$0xff] %vm348, %v856
      %v858 = vld [vmem:[%s4] sm:$0xff]
      %860 = vrot.lane.b32.xlu0 %v430, 64
      %v861 = vpop.permute.xlu0 %860
      %v862 = vsel %vm432, %v861, 0
      %864 = vmatprep.subr.mxu0 0.0
      %865 = vmatpush1.msra.mxu0 %v858
      %866 = vmatprep.subr.mxu0 0.0
      %867 = vmatpush1.msra.mxu0 0.0
      %868 = vmatprep.subr.mxu0 0.0
      %869 = vmatpush1.msra.mxu0 0.0
      %870 = vmatprep.subr.mxu0 0.0
      %871 = vmatpush1.msra.mxu0 0.0
      %872 = vmatprep.subr.mxu0 0.0
      %873 = vmatpush1.msra.mxu0 0.0
      %874 = vmatprep.subr.mxu0 0.0
      %875 = vmatpush1.msra.mxu0 0.0
      %876 = vmatprep.subr.mxu0 0.0
      %877 = vmatpush1.msra.mxu0 0.0
      %878 = vmatprep.subr.mxu0 0.0
      %879 = vmatpush1.msra.mxu0 0.0
      %880 = vmatprep.subr.mxu0 0.0
      %881 = vmatpush1.msra.mxu0 0.0
      %882 = vmatprep.subr.mxu0 0.0
      %883 = vmatpush1.msra.mxu0 0.0
      %884 = vmatprep.subr.mxu0 0.0
      %885 = vmatpush1.msra.mxu0 0.0
      %886 = vmatprep.subr.mxu0 0.0
      %887 = vmatpush1.msra.mxu0 0.0
      %888 = vmatprep.subr.mxu0 0.0
      %889 = vmatpush1.msra.mxu0 0.0
      %890 = vmatprep.subr.mxu0 0.0
      %891 = vmatpush1.msra.mxu0 0.0
      %892 = vmatprep.subr.mxu0 0.0
      %893 = vmatpush1.msra.mxu0 0.0
      %894 = vmatprep.subr.mxu0 0.0
      %895 = vmatpush1.msra.mxu0 0.0
      %896 = vmatprep.subr.mxu0 0.0
      %897 = vmatpush1.msra.mxu0 0.0
      %898 = vmatprep.subr.mxu0 0.0
      %899 = vmatpush1.msra.mxu0 0.0
      %900 = vmatprep.subr.mxu0 0.0
      %901 = vmatpush1.msra.mxu0 0.0
      %902 = vmatprep.subr.mxu0 0.0
      %903 = vmatpush1.msra.mxu0 0.0
      %904 = vmatprep.subr.mxu0 0.0
      %905 = vmatpush1.msra.mxu0 0.0
      %906 = vmatprep.subr.mxu0 0.0
      %907 = vmatpush1.msra.mxu0 0.0
      %908 = vmatprep.subr.mxu0 0.0
      %909 = vmatpush1.msra.mxu0 0.0
      %910 = vmatprep.subr.mxu0 0.0
      %911 = vmatpush1.msra.mxu0 0.0
      %912 = vmatprep.subr.mxu0 0.0
      %913 = vmatpush1.msra.mxu0 0.0
      %914 = vmatprep.subr.mxu0 0.0
      %915 = vmatpush1.msra.mxu0 0.0
      %916 = vmatprep.subr.mxu0 0.0
      %917 = vmatpush1.msra.mxu0 0.0
      %918 = vmatprep.subr.mxu0 0.0
      %919 = vmatpush1.msra.mxu0 0.0
      %920 = vmatprep.subr.mxu0 0.0
      %921 = vmatpush1.msra.mxu0 0.0
      %922 = vmatprep.subr.mxu0 0.0
      %923 = vmatpush1.msra.mxu0 0.0
      %924 = vmatprep.subr.mxu0 0.0
      %925 = vmatpush1.msra.mxu0 0.0
      %926 = vmatprep.subr.mxu0 0.0
      %927 = vmatpush1.msra.mxu0 0.0
      %928 = vmatprep.mubr.f32.mxu0 0.0
      %929 = vmatmul.mubr.f32.gmra.mrb[0].mxu0 %v862
      %v930 = vpop.f32.mrb[0].mxu0
      %v931 = vadd.f32 0.0, %v930
      %v932 = vpop.f32.mrb[0].mxu0
      %933 = vdwg.mxu0
      %v935 = vcombine.high %v931, %v931
      %v937 = vunpack.c.l.s4 1966171168
      %v938 = vunpack.c.0.s8 %v937
      %v939 = vlaneseq
      %v940 = vshrl.u32 %v939, 7
      %v941 = vsub.s32 %v938, %v940
      %v942 = vrot.slane %v931, %v941
      %v944 = vunpack.c.l.s4 1966171168
      %v945 = vunpack.c.0.s8 %v944
      %v946 = vlaneseq
      %v947 = vshrl.u32 %v946, 7
      %v948 = vsub.s32 %v945, %v947
      %v949 = vrot.slane %v935, %v948
      %v950 = vcombine.high %v942, %v942
      %v951 = vcombine.high %v949, %v949
      %v953 = vunpack.c.l.s4 1966171168
      %v954 = vunpack.c.0.s8 %v953
      %v955 = vlaneseq
      %v956 = vshrl.u32 %v955, 7
      %v957 = vsub.s32 %v954, %v956
      %v958 = vrot.slane %v942, %v957
      %v960 = vunpack.c.l.s4 1966171168
      %v961 = vunpack.c.0.s8 %v960
      %v962 = vlaneseq
      %v963 = vshrl.u32 %v962, 7
      %v964 = vsub.s32 %v961, %v963
      %v965 = vrot.slane %v949, %v964
      %v967 = vunpack.c.l.s4 1966171168
      %v968 = vunpack.c.0.s8 %v967
      %v969 = vlaneseq
      %v970 = vshrl.u32 %v969, 7
      %v971 = vsub.s32 %v968, %v970
      %v972 = vrot.slane %v950, %v971
      %v974 = vunpack.c.l.s4 1966171168
      %v975 = vunpack.c.0.s8 %v974
      %v976 = vlaneseq
      %v977 = vshrl.u32 %v976, 7
      %v978 = vsub.s32 %v975, %v977
      %v979 = vrot.slane %v951, %v978
      %v980 = vcombine.high %v958, %v958
      %v981 = vcombine.high %v965, %v965
      %v982 = vcombine.high %v972, %v972
      %v983 = vcombine.high %v979, %v979
      %v984 = vlaneseq
      %v985 = vshrl.u32 %v984, 7
      %v986 = vsub.s32 0, %v985
      %v987 = vrot.slane %v958, %v986
      %v988 = vlaneseq
      %v989 = vshrl.u32 %v988, 7
      %v990 = vsub.s32 0, %v989
      %v991 = vrot.slane %v972, %v990
      %v992 = vlaneseq
      %v993 = vshrl.u32 %v992, 7
      %v994 = vsub.s32 0, %v993
      %v995 = vrot.slane %v980, %v994
      %v996 = vlaneseq
      %v997 = vshrl.u32 %v996, 7
      %v998 = vsub.s32 0, %v997
      %v999 = vrot.slane %v982, %v998
      %v1000 = vlaneseq
      %v1001 = vshrl.u32 %v1000, 7
      %v1002 = vsub.s32 0, %v1001
      %v1003 = vrot.slane %v965, %v1002
      %v1004 = vlaneseq
      %v1005 = vshrl.u32 %v1004, 7
      %v1006 = vsub.s32 0, %v1005
      %v1007 = vrot.slane %v979, %v1006
      %v1008 = vlaneseq
      %v1009 = vshrl.u32 %v1008, 7
      %v1010 = vsub.s32 0, %v1009
      %v1011 = vrot.slane %v981, %v1010
      %v1012 = vlaneseq
      %v1013 = vshrl.u32 %v1012, 7
      %v1014 = vsub.s32 0, %v1013
      %v1015 = vrot.slane %v983, %v1014
      %1024 = vrot.lane.b32.xlu0 %v931, 120
      %v1025 = vpop.permute.xlu0 %1024
      %v1027 = vadd.f32 %v987, %v1025
      %v1028 = vadd.f32 %v991, %v1025
      %v1029 = vadd.f32 %v995, %v1025
      %v1030 = vadd.f32 %v999, %v1025
      %v1031 = vadd.f32 %v1003, %v1025
      %v1032 = vadd.f32 %v1007, %v1025
      %v1033 = vadd.f32 %v1011, %v1025
      %v1034 = vadd.f32 %v1015, %v1025
      %1043 = vrot.lane.b32.xlu0 %v524, 112
      %v1044 = vpop.permute.xlu0 %1043
      %1045 = vrot.lane.b32.xlu0 %v529, 112
      %v1046 = vpop.permute.xlu0 %1045
      %1047 = vrot.lane.b32.xlu0 %v534, 112
      %v1048 = vpop.permute.xlu0 %1047
      %1049 = vrot.lane.b32.xlu0 %v539, 112
      %v1050 = vpop.permute.xlu0 %1049
      %1051 = vrot.lane.b32.xlu0 %v544, 112
      %v1052 = vpop.permute.xlu0 %1051
      %1053 = vrot.lane.b32.xlu0 %v549, 112
      %v1054 = vpop.permute.xlu0 %1053
      %1055 = vrot.lane.b32.xlu0 %v554, 112
      %v1056 = vpop.permute.xlu0 %1055
      %1057 = vrot.lane.b32.xlu0 %v559, 112
      %v1058 = vpop.permute.xlu0 %1057
      %v1067 = vadd.f32 %v1027, %v1044
      %v1068 = vadd.f32 %v1028, %v1046
      %v1069 = vadd.f32 %v1029, %v1048
      %v1070 = vadd.f32 %v1030, %v1050
      %v1071 = vadd.f32 %v1031, %v1052
      %v1072 = vadd.f32 %v1032, %v1054
      %v1073 = vadd.f32 %v1033, %v1056
      %v1074 = vadd.f32 %v1034, %v1058
      %1075 = vrot.lane.b32.xlu0 %v426, 72
      %v1076 = vpop.permute.xlu0 %1075
      %v1078 = vadd.f32 %v1067, %v1076
      %v1079 = vadd.f32 %v1068, %v1076
      %v1080 = vadd.f32 %v1069, %v1076
      %v1081 = vadd.f32 %v1070, %v1076
      %v1082 = vadd.f32 %v1071, %v1076
      %v1083 = vadd.f32 %v1072, %v1076
      %v1084 = vadd.f32 %v1073, %v1076
      %v1085 = vadd.f32 %v1074, %v1076
      %vm1086 = vcmp.gt.f32.partialorder %v335, 0.0
      %vm1087 = vcmp.gt.f32.partialorder %v336, 0.0
      %vm1088 = vcmp.gt.f32.partialorder %v337, 0.0
      %vm1089 = vcmp.gt.f32.partialorder %v338, 0.0
      %vm1090 = vcmp.gt.f32.partialorder %v339, 0.0
      %vm1091 = vcmp.gt.f32.partialorder %v340, 0.0
      %vm1092 = vcmp.gt.f32.partialorder %v341, 0.0
      %vm1093 = vcmp.gt.f32.partialorder %v342, 0.0
      %v1094 = vsel %vm1086, %v1078, 0.0
      %v1095 = vsel %vm1087, %v1079, 0.0
      %v1096 = vsel %vm1088, %v1080, 0.0
      %v1097 = vsel %vm1089, %v1081, 0.0
      %v1098 = vsel %vm1090, %v1082, 0.0
      %v1099 = vsel %vm1091, %v1083, 0.0
      %v1100 = vsel %vm1092, %v1084, 0.0
      %v1101 = vsel %vm1093, %v1085, 0.0
      %v1102 = vadd.f32 %v335, %v1094
      %v1103 = vadd.f32 %v336, %v1095
      %v1104 = vadd.f32 %v337, %v1096
      %v1105 = vadd.f32 %v338, %v1097
      %v1106 = vadd.f32 %v339, %v1098
      %v1107 = vadd.f32 %v340, %v1099
      %v1108 = vadd.f32 %v341, %v1100
      %v1109 = vadd.f32 %v342, %v1101
      %1110 = vst.msk [vmem:[%s333] sm:$0xff] %vm432, %v1102
      %1111 = vst.msk [vmem:[%s333 + $0x8] sm:$0xff] %vm432, %v1103
      %1112 = vst.msk [vmem:[%s333 + $0x10] sm:$0xff] %vm432, %v1104
      %1113 = vst.msk [vmem:[%s333 + $0x18] sm:$0xff] %vm432, %v1105
      %1114 = vst.msk [vmem:[%s333 + $0x20] sm:$0xff] %vm432, %v1106
      %1115 = vst.msk [vmem:[%s333 + $0x28] sm:$0xff] %vm432, %v1107
      %1116 = vst.msk [vmem:[%s333 + $0x30] sm:$0xff] %vm432, %v1108
      %1117 = vst.msk [vmem:[%s333 + $0x38] sm:$0xff] %vm432, %v1109
      %p1118 = scmp.lt.s32.totalorder %s20, 1
      %s1119 = scalar_select %p1118, %s20, 1
      %s1120 = smul.addr %s1119, 8
      %s1121 = scalar_lea.vmem %s7, %s1120
      %p1122 = scmp.lt.s32.totalorder %s20, 1
      %s1123 = scalar_select %p1122, %s20, 1
      %s1124 = smul.addr %s1123, 8
      %s1125 = smul.addr %s1124, 8
      %s1126 = scalar_lea.vmem %s8, %s1125
      // Predicated region
      $region49: #{gnn_layer.1} parent=47 // pred_check
        %p1127 = pneg %p195
      $region50: #{gnn_layer.1} parent=47 // pred_check_branch
        %1129 = sbr.rel (%p1127) target = $region52
      $region51: #{gnn_layer.1} parent=47 // pred_region
        _
      $region52: #{gnn_layer.1} parent=47 // pred_fallthru
        _
      // Predicated region
      $region53: #{gnn_layer.1} parent=47 // pred_check
        %p1130 = pneg %p221
      $region54: #{gnn_layer.1} parent=47 // pred_check_branch
        %1132 = sbr.rel (%p1130) target = $region56
      $region55: #{gnn_layer.1} parent=47 // pred_region
        _
      $region56: #{gnn_layer.1} parent=47 // pred_fallthru
        _
    $region48: #{gnn_layer.1} parent=5 // pred_fallthru
      _
    %p1133 = scmp.le.s32.totalorder 2, %s15
    // Predicated region
    $region57: #{gnn_layer.1} parent=5 // pred_check
      %p1134 = pneg %p1133
    $region58: #{gnn_layer.1} parent=5 // pred_check_branch
      %1136 = sbr.rel (%p1134) target = $region60
    $region59: #{gnn_layer.1} parent=5 // pred_region
      %s1137 = ssub.s32 %s15, 2
      // Predicated region
      $region61: #{gnn_layer.1} parent=59 // pred_check
        %p1138 = pneg %p201
      $region62: #{gnn_layer.1} parent=59 // pred_check_branch
        %1140 = sbr.rel (%p1138) target = $region64
      $region63: #{gnn_layer.1} parent=59 // pred_region
        %p1141 = scmp.lt.s32.totalorder %s21, 1
        %s1142 = scalar_select %p1141, %s21, 1
        %s1143 = smul.addr %s1142, 8
        %s1144 = scalar_lea.vmem %s7, %s1143
      $region64: #{gnn_layer.1} parent=59 // pred_fallthru
        _
      // Predicated region
      $region65: #{gnn_layer.1} parent=59 // pred_check
        %p1145 = pneg %p227
      $region66: #{gnn_layer.1} parent=59 // pred_check_branch
        %1147 = sbr.rel (%p1145) target = $region68
      $region67: #{gnn_layer.1} parent=59 // pred_region
        %p1148 = scmp.lt.s32.totalorder %s21, 1
        %s1149 = scalar_select %p1148, %s21, 1
        %s1150 = smul.addr %s1149, 8
        %s1151 = smul.addr %s1150, 8
        %s1152 = scalar_lea.vmem %s8, %s1151
      $region68: #{gnn_layer.1} parent=59 // pred_fallthru
        _
    $region60: #{gnn_layer.1} parent=5 // pred_fallthru
      _
  $region6: #{gnn_layer.1} parent=0 // loop_footer
    %s19 = sadd.s32 1, %s15
  $region7: #{gnn_layer.1} parent=0 // loop_footer_branch
    %14 = sbr.rel target = $region3
  $region8: #{gnn_layer.1} parent=0 // loop_exit
    _

</llo_original>
